<compile_context>
chip_gen: v7x
topology: tpu7x:2x2x1
jax: 0.10.0
libtpu: 0.0.40
codegen_flags: <defaults>
</compile_context>

<pallas_src>
import functools

import jax
import jax.numpy as jnp
from jax.experimental import pallas as pl
from jax.experimental.pallas import tpu as pltpu

_LANE = 128
_SUBLANE_BF16 = 16  # bf16 packs 2 rows per sublane -> 16 rows per packed vreg


def _round_up(n, m):
    return ((n + m - 1) // m) * m


def _leaky_relu(x, slope=0.2):
    # Single VPU max (vs. compare + select with jnp.where).
    return jnp.maximum(x, slope * x)


def _disc_kernel(x_ref, w1_ref, b1_ref, w2_ref, b2_ref, w3_ref, b3_ref, o_ref):
    # In-kernel cast: x arrives f32, cast to bf16 on the VPU (hidden under MXU).
    x = x_ref[...].astype(jnp.bfloat16)
    # Layer 1: Linear (bf16 in, f32 accumulate) + LeakyReLU(0.2).
    # Dropout(0.1) == identity in eval mode.
    h = jnp.dot(x, w1_ref[...], preferred_element_type=jnp.float32)
    h = _leaky_relu(h + b1_ref[...])
    # Layer 2: Linear + LeakyReLU(0.2).
    h = jnp.dot(h.astype(jnp.bfloat16), w2_ref[...],
                preferred_element_type=jnp.float32)
    h = _leaky_relu(h + b2_ref[...])
    # Layer 3: Linear (lane-padded output) + Sigmoid.
    h = jnp.dot(h.astype(jnp.bfloat16), w3_ref[...],
                preferred_element_type=jnp.float32)
    h = h + b3_ref[...]
    # sigmoid(h) = 1 / (1 + exp(-h)): exp on the EUP, approx reciprocal on EUP.
    o_ref[...] = pl.reciprocal(1.0 + jnp.exp(-h), approx=True).astype(o_ref.dtype)


def prepare_params(params):
    """One-time parameter prep (do NOT call per forward):
    zero-pads hidden/output feature dims up to a multiple of 128 lanes and
    casts weights to bf16. Padded weight rows/cols and bias lanes are zero,
    so padded activations stay exactly zero through LeakyReLU and contribute
    nothing to subsequent layers. Returns (prepared_param_dict, out_features).
    """
    w1, b1 = params["w1"], params["b1"]  # (in, h1), (1, h1)
    w2, b2 = params["w2"], params["b2"]  # (h1, h2), (1, h2)
    w3, b3 = params["w3"], params["b3"]  # (h2, out), (1, out)
    h1 = w1.shape[1]
    h2 = w2.shape[1]
    out_f = w3.shape[1]
    h1p = _round_up(h1, _LANE)
    h2p = _round_up(h2, _LANE)
    outp = _round_up(out_f, _LANE)

    w1 = jnp.pad(w1, ((0, 0), (0, h1p - h1)))
    b1 = jnp.pad(b1, ((0, 0), (0, h1p - h1)))
    w2 = jnp.pad(w2, ((0, h1p - h1), (0, h2p - h2)))
    b2 = jnp.pad(b2, ((0, 0), (0, h2p - h2)))
    w3 = jnp.pad(w3, ((0, h2p - h2), (0, outp - out_f)))
    b3 = jnp.pad(b3, ((0, 0), (0, outp - out_f)))

    prepared = {
        "w1": w1.astype(jnp.bfloat16), "b1": b1.astype(jnp.float32),
        "w2": w2.astype(jnp.bfloat16), "b2": b2.astype(jnp.float32),
        "w3": w3.astype(jnp.bfloat16), "b3": b3.astype(jnp.float32),
    }
    return prepared, out_f


@functools.partial(jax.jit, static_argnames=("out_features", "block_b"))
def discriminator_forward(x, prepared, out_features, block_b=512):
    """x: (B, input_size) float32. prepared: output of prepare_params."""
    w1, b1 = prepared["w1"], prepared["b1"]  # (in, h1p) bf16, (1, h1p) f32
    w2, b2 = prepared["w2"], prepared["b2"]
    w3, b3 = prepared["w3"], prepared["b3"]

    B, in_f = x.shape
    h1p = w1.shape[1]
    h2p = w2.shape[1]
    outp = w3.shape[1]

    # Batch tiling:
    #  * tiny batches (<=32 rows after rounding to the 16-row bf16 sublane
    #    pack): a single grid step.
    #  * mid-size batches (up to 2*block_b): split into >=2 parallel steps so
    #    both TensorCores on v7x get work (negligible per-step cost on
    #    single-TC v5e/v6e).
    #  * large batches: block_b-row tiles (coarse, near-roofline on v5e/v6e).
    B16 = _round_up(B, _SUBLANE_BF16)
    if B16 <= 32:
        bb = B16
    elif B16 <= 2 * block_b:
        bb = min(block_b, _round_up((B + 1) // 2, _SUBLANE_BF16))
    else:
        bb = block_b
    B_pad = _round_up(B, bb)
    if B_pad != B:
        x = jnp.pad(x, ((0, B_pad - B), (0, 0)))

    grid = (B_pad // bb,)
    full = lambda r, c: pl.BlockSpec((r, c), lambda i: (0, 0))

    flops = 2 * B_pad * (in_f * h1p + h1p * h2p + h2p * outp)
    bytes_accessed = (
        4 * x.size                                   # f32 activations in
        + 2 * (w1.size + w2.size + w3.size)          # bf16 weights
        + 4 * (b1.size + b2.size + b3.size)          # f32 biases
        + 4 * B_pad * outp                           # f32 output
    )
    cost = pl.CostEstimate(
        flops=flops,
        transcendentals=2 * B_pad * outp,            # exp + reciprocal
        bytes_accessed=bytes_accessed,
    )

    out = pl.pallas_call(
        _disc_kernel,
        out_shape=jax.ShapeDtypeStruct((B_pad, outp), jnp.float32),
        grid_spec=pltpu.PrefetchScalarGridSpec(
            num_scalar_prefetch=0,
            grid=grid,
            in_specs=[
                pl.BlockSpec((bb, in_f), lambda i: (i, 0)),  # x tile (f32)
                full(in_f, h1p), full(1, h1p),
                full(h1p, h2p), full(1, h2p),
                full(h2p, outp), full(1, outp),
            ],
            out_specs=pl.BlockSpec((bb, outp), lambda i: (i, 0)),
        ),
        compiler_params=pltpu.CompilerParams(
            dimension_semantics=("parallel",)
        ),
        cost_estimate=cost,
    )(x, w1, b1, w2, b2, w3, b3)

    return out[:B, :out_features]


def init_params(key, input_size, hidden_size1, hidden_size2, output_size,
                ini_normal_variance=0.1):
    """Deterministic init mirroring Discriminator._initialize_weights:
    weights ~ N(0, 0.1); biases set to small deterministic normals too."""
    ks = jax.random.split(key, 6)
    # PyTorch Linear weight is (out, in); we store the transpose (in, out).
    w1 = ini_normal_variance * jax.random.normal(ks[0], (input_size, hidden_size1), jnp.float32)
    w2 = ini_normal_variance * jax.random.normal(ks[1], (hidden_size1, hidden_size2), jnp.float32)
    w3 = ini_normal_variance * jax.random.normal(ks[2], (hidden_size2, output_size), jnp.float32)
    b1 = ini_normal_variance * jax.random.normal(ks[3], (1, hidden_size1), jnp.float32)
    b2 = ini_normal_variance * jax.random.normal(ks[4], (1, hidden_size2), jnp.float32)
    b3 = ini_normal_variance * jax.random.normal(ks[5], (1, output_size), jnp.float32)
    return {"w1": w1, "b1": b1, "w2": w2, "b2": b2, "w3": w3, "b3": b3}


def reference_forward(x, params):
    h = x @ params["w1"] + params["b1"]
    h = jnp.maximum(h, 0.2 * h)
    h = h @ params["w2"] + params["b2"]
    h = jnp.maximum(h, 0.2 * h)
    h = h @ params["w3"] + params["b3"]
    return jax.nn.sigmoid(h)


if __name__ == "__main__":
    key = jax.random.PRNGKey(0)
    k_x, k_p = jax.random.split(key)

    # Small shapes consistent with the module: (batch, input_size) MLP input.
    batch, input_size, hidden1, hidden2, output_size = 8, 32, 64, 32, 4

    x = jax.random.normal(k_x, (batch, input_size), jnp.float32)
    params = init_params(k_p, input_size, hidden1, hidden2, output_size)
    prepared, out_f = prepare_params(params)
    prepared = jax.tree_util.tree_map(jax.block_until_ready, prepared)

    out = discriminator_forward(x, prepared, out_f)
    out = jax.block_until_ready(out)

    ref = reference_forward(x, params)
    assert out.shape == (batch, output_size)
    # bf16 MXU inputs + approx reciprocal -> relaxed tolerance vs f32 reference.
    assert jnp.allclose(out, ref, atol=2e-2, rtol=2e-2), "mismatch vs reference"

    # Exercise the non-multiple-batch padding path (single grid step).
    x2 = jax.random.normal(jax.random.PRNGKey(1), (10, input_size), jnp.float32)
    out2 = jax.block_until_ready(discriminator_forward(x2, prepared, out_f))
    ref2 = reference_forward(x2, params)
    assert out2.shape == (10, output_size)
    assert jnp.allclose(out2, ref2, atol=2e-2, rtol=2e-2), "mismatch (padded batch)"

    # Exercise the mid-size-batch path (>=2 parallel grid steps).
    x3 = jax.random.normal(jax.random.PRNGKey(2), (40, input_size), jnp.float32)
    out3 = jax.block_until_ready(discriminator_forward(x3, prepared, out_f))
    ref3 = reference_forward(x3, params)
    assert out3.shape == (40, output_size)
    assert jnp.allclose(out3, ref3, atol=2e-2, rtol=2e-2), "mismatch (multi-step grid)"

    print("KERNEL_OK")
</pallas_src>

<mosaic_0001>
module attributes {stable_mosaic.version = 11 : i64} {
  func.func @_disc_kernel(%arg0: i32, %arg1: memref<16x32xf32, #tpu.memory_space<vmem>>, %arg2: memref<32x128xbf16, #tpu.memory_space<vmem>>, %arg3: memref<1x128xf32, #tpu.memory_space<vmem>>, %arg4: memref<128x128xbf16, #tpu.memory_space<vmem>>, %arg5: memref<1x128xf32, #tpu.memory_space<vmem>>, %arg6: memref<128x128xbf16, #tpu.memory_space<vmem>>, %arg7: memref<1x128xf32, #tpu.memory_space<vmem>>, %arg8: memref<16x128xf32, #tpu.memory_space<vmem>>) attributes {dimension_semantics = [#tpu.dimension_semantics<parallel>], iteration_bounds = array<i64: 1>, scalar_prefetch = 0 : i64, scratch_operands = 0 : i64, tpu.core_type = #tpu.core_type<tc>, window_params = [{transform_indices = @transform_0, window_bounds = array<i64: 16, 32>}, {pipeline_mode = #tpu.pipeline_mode<synchronous>, transform_indices = @transform_1, window_bounds = array<i64: 32, 128>}, {pipeline_mode = #tpu.pipeline_mode<synchronous>, transform_indices = @transform_2, window_bounds = array<i64: 1, 128>}, {pipeline_mode = #tpu.pipeline_mode<synchronous>, transform_indices = @transform_3, window_bounds = array<i64: 128, 128>}, {pipeline_mode = #tpu.pipeline_mode<synchronous>, transform_indices = @transform_4, window_bounds = array<i64: 1, 128>}, {pipeline_mode = #tpu.pipeline_mode<synchronous>, transform_indices = @transform_5, window_bounds = array<i64: 128, 128>}, {pipeline_mode = #tpu.pipeline_mode<synchronous>, transform_indices = @transform_6, window_bounds = array<i64: 1, 128>}, {transform_indices = @transform_7, window_bounds = array<i64: 16, 128>}]} {
    %c0 = arith.constant 0 : index
    %c0_0 = arith.constant 0 : index
    %0 = vector.load %arg1[%c0, %c0_0] : memref<16x32xf32, #tpu.memory_space<vmem>>, vector<16x32xf32>
    %1 = arith.truncf %0 : vector<16x32xf32> to vector<16x32xbf16>
    %c0_1 = arith.constant 0 : index
    %c0_2 = arith.constant 0 : index
    %2 = vector.load %arg2[%c0_1, %c0_2] : memref<32x128xbf16, #tpu.memory_space<vmem>>, vector<32x128xbf16>
    %cst = arith.constant dense<0.000000e+00> : vector<16x128xf32>
    %3 = tpu.matmul %1, %2, %cst {dimension_numbers = #tpu.dot_dimension_numbers<[1], [0], [0], [1], [0, 0, 1, 1], [], []>} : vector<16x32xbf16>, vector<32x128xbf16>, vector<16x128xf32> -> vector<16x128xf32>
    %c0_3 = arith.constant 0 : index
    %c0_4 = arith.constant 0 : index
    %4 = vector.load %arg3[%c0_3, %c0_4] : memref<1x128xf32, #tpu.memory_space<vmem>>, vector<1x128xf32>
    %5 = vector.broadcast %4 : vector<1x128xf32> to vector<16x128xf32>
    %6 = arith.addf %3, %5 : vector<16x128xf32>
    %cst_5 = arith.constant 2.000000e-01 : f32
    %7 = vector.broadcast %cst_5 : f32 to vector<16x128xf32>
    %8 = arith.mulf %7, %6 : vector<16x128xf32>
    %9 = arith.maximumf %6, %8 : vector<16x128xf32>
    %10 = arith.truncf %9 : vector<16x128xf32> to vector<16x128xbf16>
    %c0_6 = arith.constant 0 : index
    %c0_7 = arith.constant 0 : index
    %11 = vector.load %arg4[%c0_6, %c0_7] : memref<128x128xbf16, #tpu.memory_space<vmem>>, vector<128x128xbf16>
    %cst_8 = arith.constant dense<0.000000e+00> : vector<16x128xf32>
    %12 = tpu.matmul %10, %11, %cst_8 {dimension_numbers = #tpu.dot_dimension_numbers<[1], [0], [0], [1], [0, 0, 1, 1], [], []>} : vector<16x128xbf16>, vector<128x128xbf16>, vector<16x128xf32> -> vector<16x128xf32>
    %c0_9 = arith.constant 0 : index
    %c0_10 = arith.constant 0 : index
    %13 = vector.load %arg5[%c0_9, %c0_10] : memref<1x128xf32, #tpu.memory_space<vmem>>, vector<1x128xf32>
    %14 = vector.broadcast %13 : vector<1x128xf32> to vector<16x128xf32>
    %15 = arith.addf %12, %14 : vector<16x128xf32>
    %cst_11 = arith.constant 2.000000e-01 : f32
    %16 = vector.broadcast %cst_11 : f32 to vector<16x128xf32>
    %17 = arith.mulf %16, %15 : vector<16x128xf32>
    %18 = arith.maximumf %15, %17 : vector<16x128xf32>
    %19 = arith.truncf %18 : vector<16x128xf32> to vector<16x128xbf16>
    %c0_12 = arith.constant 0 : index
    %c0_13 = arith.constant 0 : index
    %20 = vector.load %arg6[%c0_12, %c0_13] : memref<128x128xbf16, #tpu.memory_space<vmem>>, vector<128x128xbf16>
    %cst_14 = arith.constant dense<0.000000e+00> : vector<16x128xf32>
    %21 = tpu.matmul %19, %20, %cst_14 {dimension_numbers = #tpu.dot_dimension_numbers<[1], [0], [0], [1], [0, 0, 1, 1], [], []>} : vector<16x128xbf16>, vector<128x128xbf16>, vector<16x128xf32> -> vector<16x128xf32>
    %c0_15 = arith.constant 0 : index
    %c0_16 = arith.constant 0 : index
    %22 = vector.load %arg7[%c0_15, %c0_16] : memref<1x128xf32, #tpu.memory_space<vmem>>, vector<1x128xf32>
    %23 = vector.broadcast %22 : vector<1x128xf32> to vector<16x128xf32>
    %24 = arith.addf %21, %23 : vector<16x128xf32>
    %cst_17 = arith.constant 0.000000e+00 : f32
    %25 = vector.broadcast %cst_17 : f32 to vector<16x128xf32>
    %26 = arith.subf %25, %24 : vector<16x128xf32>
    %27 = math.exp %26 : vector<16x128xf32>
    %cst_18 = arith.constant 1.000000e+00 : f32
    %28 = vector.broadcast %cst_18 : f32 to vector<16x128xf32>
    %29 = arith.addf %28, %27 : vector<16x128xf32>
    %30 = tpu.reciprocal %29 {approx = true} : vector<16x128xf32> -> vector<16x128xf32>
    %c0_19 = arith.constant 0 : index
    %c0_20 = arith.constant 0 : index
    %31 = vector.load %arg8[%c0_19, %c0_20] : memref<16x128xf32, #tpu.memory_space<vmem>>, vector<16x128xf32>
    tpu.vector_store %arg8[%c0_19, %c0_20], %30 {strides = array<i32>} : memref<16x128xf32, #tpu.memory_space<vmem>>, vector<16x128xf32>,
    return
  }
  func.func @transform_0(%arg0: i32) -> (i32, i32) {
    %c0_i32 = arith.constant 0 : i32
    %c0_i32_0 = arith.constant 0 : i32
    return %arg0, %c0_i32 : i32, i32
  }
  func.func @transform_1(%arg0: i32) -> (i32, i32) {
    %c0_i32 = arith.constant 0 : i32
    %c0_i32_0 = arith.constant 0 : i32
    %c0_i32_1 = arith.constant 0 : i32
    return %c0_i32, %c0_i32_0 : i32, i32
  }
  func.func @transform_2(%arg0: i32) -> (i32, i32) {
    %c0_i32 = arith.constant 0 : i32
    %c0_i32_0 = arith.constant 0 : i32
    %c0_i32_1 = arith.constant 0 : i32
    return %c0_i32, %c0_i32_0 : i32, i32
  }
  func.func @transform_3(%arg0: i32) -> (i32, i32) {
    %c0_i32 = arith.constant 0 : i32
    %c0_i32_0 = arith.constant 0 : i32
    %c0_i32_1 = arith.constant 0 : i32
    return %c0_i32, %c0_i32_0 : i32, i32
  }
  func.func @transform_4(%arg0: i32) -> (i32, i32) {
    %c0_i32 = arith.constant 0 : i32
    %c0_i32_0 = arith.constant 0 : i32
    %c0_i32_1 = arith.constant 0 : i32
    return %c0_i32, %c0_i32_0 : i32, i32
  }
  func.func @transform_5(%arg0: i32) -> (i32, i32) {
    %c0_i32 = arith.constant 0 : i32
    %c0_i32_0 = arith.constant 0 : i32
    %c0_i32_1 = arith.constant 0 : i32
    return %c0_i32, %c0_i32_0 : i32, i32
  }
  func.func @transform_6(%arg0: i32) -> (i32, i32) {
    %c0_i32 = arith.constant 0 : i32
    %c0_i32_0 = arith.constant 0 : i32
    %c0_i32_1 = arith.constant 0 : i32
    return %c0_i32, %c0_i32_0 : i32, i32
  }
  func.func @transform_7(%arg0: i32) -> (i32, i32) {
    %c0_i32 = arith.constant 0 : i32
    %c0_i32_0 = arith.constant 0 : i32
    return %arg0, %c0_i32 : i32, i32
  }
}

</mosaic_0001>

<llo_original>
// kernel: discriminator_forward.1
$region0: #{discriminator_forward.1}
  #allocation0 [shape = 'u32[]', space=smem, size = 0x4, offset = 0x4, fixed_abs, tag = 'smem constant byte address 0x4 - core index']
  #allocation1 [shape = 'u32[144,128]{1,0:T(1,128)}', space=vmem, size = 0x12000, scoped, tag = 'internal scratch']
  %s0 = inlined_call_operand.vmem [shape: f32[16,32], index: 0, kind: input, shape index: {}]
  %s1 = inlined_call_operand.vmem [shape: bf16[32,128], index: 1, kind: input, shape index: {}]
  %s2 = inlined_call_operand.vmem [shape: f32[1,128], index: 2, kind: input, shape index: {}]
  %s3 = inlined_call_operand.hbm [shape: bf16[128,128], index: 3, kind: input, shape index: {}]
  %s4 = inlined_call_operand.vmem [shape: f32[1,128], index: 4, kind: input, shape index: {}]
  %s5 = inlined_call_operand.hbm [shape: bf16[128,128], index: 5, kind: input, shape index: {}]
  %s6 = inlined_call_operand.vmem [shape: f32[1,128], index: 6, kind: input, shape index: {}]
  %s7 = inlined_call_operand.vmem [shape: f32[16,128], index: 7, kind: output, shape index: {}]
  %s8 = sld [smem:[#allocation0]]
  $region46: #{discriminator_forward.1} parent=0
    _
  %s10 = ssub.s32 1, %s8
  %s11 = scalar_select 0, %s10, %s8
  $region1: #{discriminator_forward.1} parent=0
    #allocation2 [shape = 'u8[32768]{0}', space=vmem, size = 0x8000, scoped, tag = 'input window, operand 3, single buffered']
    #allocation3 [shape = 's32[1]{0}', space=sflag, size = 0x4, scoped, tag = 'scoped memory for discriminator_forward.1']
    #allocation4 [shape = 'u8[32768]{0}', space=vmem, size = 0x8000, scoped, tag = 'input window, operand 5, single buffered']
    #allocation5 [shape = 's32[1]{0}', space=sflag, size = 0x4, scoped, tag = 'scoped memory for discriminator_forward.1']
    %12 = vsyncpa [#allocation3], 0
    %13 = vsyncpa [#allocation5], 0
    // Predicated region
    $region2: #{discriminator_forward.1} parent=1 // pred_check
      _
    $region3: #{discriminator_forward.1} parent=1 // pred_check_branch
      %15 = sbr.rel (0) target = $region5
    $region4: #{discriminator_forward.1} parent=1 // pred_region
      _
    $region5: #{discriminator_forward.1} parent=1 // pred_fallthru
      _
    // Predicated region
    $region6: #{discriminator_forward.1} parent=1 // pred_check
      _
    $region7: #{discriminator_forward.1} parent=1 // pred_check_branch
      %17 = sbr.rel (0) target = $region9
    $region8: #{discriminator_forward.1} parent=1 // pred_region
      _
    $region9: #{discriminator_forward.1} parent=1 // pred_fallthru
      _
    // Predicated region
    $region10: #{discriminator_forward.1} parent=1 // pred_check
      _
    $region11: #{discriminator_forward.1} parent=1 // pred_check_branch
      %19 = sbr.rel (0) target = $region13
    $region12: #{discriminator_forward.1} parent=1 // pred_region
      _
    $region13: #{discriminator_forward.1} parent=1 // pred_fallthru
      _
    // Predicated region
    $region14: #{discriminator_forward.1} parent=1 // pred_check
      _
    $region15: #{discriminator_forward.1} parent=1 // pred_check_branch
      %21 = sbr.rel (0) target = $region17
    $region16: #{discriminator_forward.1} parent=1 // pred_region
      %s23 = ssub.s32 1024, 1024
      %24 = vsyncadd [#allocation3], %s23
      %s25 = sshll.u32 [#allocation2], 4
      %s26 = int_to_ptr.vmem [resolvable:$true] %s25
      %31 = dma.hbm_to_vmem [thread:$0]  %s3, 1024, %s26, [#allocation3], 64, 64, 4
    $region17: #{discriminator_forward.1} parent=1 // pred_fallthru
      _
    // Predicated region
    $region18: #{discriminator_forward.1} parent=1 // pred_check
      _
    $region19: #{discriminator_forward.1} parent=1 // pred_check_branch
      %33 = sbr.rel (0) target = $region21
    $region20: #{discriminator_forward.1} parent=1 // pred_region
      _
    $region21: #{discriminator_forward.1} parent=1 // pred_fallthru
      _
    // Predicated region
    $region22: #{discriminator_forward.1} parent=1 // pred_check
      _
    $region23: #{discriminator_forward.1} parent=1 // pred_check_branch
      %35 = sbr.rel (0) target = $region25
    $region24: #{discriminator_forward.1} parent=1 // pred_region
      %s37 = ssub.s32 1024, 1024
      %38 = vsyncadd [#allocation5], %s37
      %s39 = sshll.u32 [#allocation4], 4
      %s40 = int_to_ptr.vmem [resolvable:$true] %s39
      %45 = dma.hbm_to_vmem [thread:$0]  %s5, 1024, %s40, [#allocation5], 64, 64, 4
    $region25: #{discriminator_forward.1} parent=1 // pred_fallthru
      _
    // Predicated region
    $region26: #{discriminator_forward.1} parent=1 // pred_check
      _
    $region27: #{discriminator_forward.1} parent=1 // pred_check_branch
      %47 = sbr.rel (0) target = $region29
    $region28: #{discriminator_forward.1} parent=1 // pred_region
      _
    $region29: #{discriminator_forward.1} parent=1 // pred_fallthru
      _
    // Predicated region
    $region30: #{discriminator_forward.1} parent=1 // pred_check
      _
    $region31: #{discriminator_forward.1} parent=1 // pred_check_branch
      %49 = sbr.rel (0) target = $region33
    $region32: #{discriminator_forward.1} parent=1 // pred_region
      %50 = dma.done [#allocation3], 1024
    $region33: #{discriminator_forward.1} parent=1 // pred_fallthru
      _
    // Predicated region
    $region34: #{discriminator_forward.1} parent=1 // pred_check
      _
    $region35: #{discriminator_forward.1} parent=1 // pred_check_branch
      %52 = sbr.rel (0) target = $region37
    $region36: #{discriminator_forward.1} parent=1 // pred_region
      %53 = dma.done [#allocation5], 1024
    $region37: #{discriminator_forward.1} parent=1 // pred_fallthru
      _
    %v55 = vld [vmem:[%s0] sm:$0xff]
    %v56 = vld [vmem:[%s0 + $0x8] sm:$0xff]
    %v57 = vpack.c.bf16 %v56, %v55
    %v58 = vld [vmem:[%s1] sm:$0xf]
    %v59 = vld [vmem:[%s1 + $0x4] sm:$0xf]
    %v60 = vld [vmem:[%s1 + $0x8] sm:$0xf]
    %v61 = vld [vmem:[%s1 + $0xc] sm:$0xf]
    %v62 = vld [vmem:[%s2] sm:$0x1]
    %v64 = vlaneseq
    %v65 = vshrl.u32 %v64, 7
    %v66 = vsub.s32 0, %v65
    %v67 = vrot.slane %v62, %v66
    %v73 = vunpack.c.l.b16 %v58
    %v74 = vunpack.c.l.b16 %v59
    %v75 = vunpack.c.l.b16 %v60
    %v76 = vunpack.c.l.b16 %v61
    %v77 = vpack.c.b16 %v74, %v73
    %v78 = vpack.c.b16 %v76, %v75
    %vm81 = vcmask 261120
    %v83 = vsel %vm81, %v57, 0
    %85 = vmatprep.subr.bf16.mxu0 0
    %86 = vmatpush1.bf16.msra.mxu0 %v77
    %87 = vmatprep.subr.bf16.mxu0 0
    %88 = vmatpush1.bf16.msra.mxu0 %v78
    %89 = vmatprep.subr.bf16.mxu0 0
    %90 = vmatpush1.bf16.msra.mxu0 0
    %91 = vmatprep.subr.bf16.mxu0 0
    %92 = vmatpush1.bf16.msra.mxu0 0
    %93 = vmatprep.subr.bf16.mxu0 0
    %94 = vmatpush1.bf16.msra.mxu0 0
    %95 = vmatprep.subr.bf16.mxu0 0
    %96 = vmatpush1.bf16.msra.mxu0 0
    %97 = vmatprep.subr.bf16.mxu0 0
    %98 = vmatpush1.bf16.msra.mxu0 0
    %99 = vmatprep.subr.bf16.mxu0 0
    %100 = vmatpush1.bf16.msra.mxu0 0
    %101 = vmatprep.subr.bf16.mxu0 0
    %102 = vmatpush1.bf16.msra.mxu0 0
    %103 = vmatprep.subr.bf16.mxu0 0
    %104 = vmatpush1.bf16.msra.mxu0 0
    %105 = vmatprep.subr.bf16.mxu0 0
    %106 = vmatpush1.bf16.msra.mxu0 0
    %107 = vmatprep.subr.bf16.mxu0 0
    %108 = vmatpush1.bf16.msra.mxu0 0
    %109 = vmatprep.subr.bf16.mxu0 0
    %110 = vmatpush1.bf16.msra.mxu0 0
    %111 = vmatprep.subr.bf16.mxu0 0
    %112 = vmatpush1.bf16.msra.mxu0 0
    %113 = vmatprep.subr.bf16.mxu0 0
    %114 = vmatpush1.bf16.msra.mxu0 0
    %115 = vmatprep.subr.bf16.mxu0 0
    %116 = vmatpush1.bf16.msra.mxu0 0
    %117 = vmatprep.mubr.bf16.mxu0 0
    %118 = vmatmul.mubr.bf16.gmra.mrb[0].mxu0 %v83
    %v119 = vpop.f32.mrb[0].mxu0
    %v120 = vadd.f32 %v67, %v119
    %v121 = vpop.f32.mrb[0].mxu0
    %v122 = vpop.f32.mrb[0].mxu0
    %v123 = vadd.f32 %v67, %v122
    %v124 = vpop.f32.mrb[0].mxu0
    %125 = vdwg.mxu0
    %v126 = vmul.f32 %v120, 0.2
    %v127 = vmul.f32 %v123, 0.2
    %v128 = vmax.f32 %v120, %v126
    %v129 = vmax.f32 %v123, %v127
    %v130 = vpack.c.bf16 %v129, %v128
    %v131 = vld [vmem:[#allocation2] sm:$0xf]
    %v132 = vld [vmem:[#allocation2 + $0x4] sm:$0xf]
    %v133 = vld [vmem:[#allocation2 + $0x8] sm:$0xf]
    %v134 = vld [vmem:[#allocation2 + $0xc] sm:$0xf]
    %v135 = vld [vmem:[#allocation2 + $0x10] sm:$0xf]
    %v136 = vld [vmem:[#allocation2 + $0x14] sm:$0xf]
    %v137 = vld [vmem:[#allocation2 + $0x18] sm:$0xf]
    %v138 = vld [vmem:[#allocation2 + $0x1c] sm:$0xf]
    %v139 = vld [vmem:[#allocation2 + $0x20] sm:$0xf]
    %v140 = vld [vmem:[#allocation2 + $0x24] sm:$0xf]
    %v141 = vld [vmem:[#allocation2 + $0x28] sm:$0xf]
    %v142 = vld [vmem:[#allocation2 + $0x2c] sm:$0xf]
    %v143 = vld [vmem:[#allocation2 + $0x30] sm:$0xf]
    %v144 = vld [vmem:[#allocation2 + $0x34] sm:$0xf]
    %v145 = vld [vmem:[#allocation2 + $0x38] sm:$0xf]
    %v146 = vld [vmem:[#allocation2 + $0x3c] sm:$0xf]
    %v147 = vld [vmem:[%s4] sm:$0x1]
    %v149 = vlaneseq
    %v150 = vshrl.u32 %v149, 7
    %v151 = vsub.s32 0, %v150
    %v152 = vrot.slane %v147, %v151
    %v170 = vunpack.c.l.b16 %v131
    %v171 = vunpack.c.l.b16 %v132
    %v172 = vunpack.c.l.b16 %v133
    %v173 = vunpack.c.l.b16 %v134
    %v174 = vunpack.c.l.b16 %v135
    %v175 = vunpack.c.l.b16 %v136
    %v176 = vunpack.c.l.b16 %v137
    %v177 = vunpack.c.l.b16 %v138
    %v178 = vunpack.c.l.b16 %v139
    %v179 = vunpack.c.l.b16 %v140
    %v180 = vunpack.c.l.b16 %v141
    %v181 = vunpack.c.l.b16 %v142
    %v182 = vunpack.c.l.b16 %v143
    %v183 = vunpack.c.l.b16 %v144
    %v184 = vunpack.c.l.b16 %v145
    %v185 = vunpack.c.l.b16 %v146
    %v186 = vpack.c.b16 %v171, %v170
    %v187 = vpack.c.b16 %v173, %v172
    %v188 = vpack.c.b16 %v175, %v174
    %v189 = vpack.c.b16 %v177, %v176
    %v190 = vpack.c.b16 %v179, %v178
    %v191 = vpack.c.b16 %v181, %v180
    %v192 = vpack.c.b16 %v183, %v182
    %v193 = vpack.c.b16 %v185, %v184
    %202 = vmatprep.subr.bf16.mxu0 0
    %203 = vmatpush1.bf16.msra.mxu0 %v186
    %204 = vmatprep.subr.bf16.mxu0 0
    %205 = vmatpush1.bf16.msra.mxu0 %v187
    %206 = vmatprep.subr.bf16.mxu0 0
    %207 = vmatpush1.bf16.msra.mxu0 %v188
    %208 = vmatprep.subr.bf16.mxu0 0
    %209 = vmatpush1.bf16.msra.mxu0 %v189
    %210 = vmatprep.subr.bf16.mxu0 0
    %211 = vmatpush1.bf16.msra.mxu0 %v190
    %212 = vmatprep.subr.bf16.mxu0 0
    %213 = vmatpush1.bf16.msra.mxu0 %v191
    %214 = vmatprep.subr.bf16.mxu0 0
    %215 = vmatpush1.bf16.msra.mxu0 %v192
    %216 = vmatprep.subr.bf16.mxu0 0
    %217 = vmatpush1.bf16.msra.mxu0 %v193
    %218 = vmatprep.subr.bf16.mxu0 0
    %219 = vmatpush1.bf16.msra.mxu0 0
    %220 = vmatprep.subr.bf16.mxu0 0
    %221 = vmatpush1.bf16.msra.mxu0 0
    %222 = vmatprep.subr.bf16.mxu0 0
    %223 = vmatpush1.bf16.msra.mxu0 0
    %224 = vmatprep.subr.bf16.mxu0 0
    %225 = vmatpush1.bf16.msra.mxu0 0
    %226 = vmatprep.subr.bf16.mxu0 0
    %227 = vmatpush1.bf16.msra.mxu0 0
    %228 = vmatprep.subr.bf16.mxu0 0
    %229 = vmatpush1.bf16.msra.mxu0 0
    %230 = vmatprep.subr.bf16.mxu0 0
    %231 = vmatpush1.bf16.msra.mxu0 0
    %232 = vmatprep.subr.bf16.mxu0 0
    %233 = vmatpush1.bf16.msra.mxu0 0
    %234 = vmatprep.mubr.bf16.mxu0 0
    %235 = vmatmul.mubr.bf16.gmra.mrb[0].mxu0 %v130
    %v236 = vpop.f32.mrb[0].mxu0
    %v237 = vadd.f32 %v152, %v236
    %v238 = vpop.f32.mrb[0].mxu0
    %v239 = vpop.f32.mrb[0].mxu0
    %v240 = vadd.f32 %v152, %v239
    %v241 = vpop.f32.mrb[0].mxu0
    %242 = vdwg.mxu0
    %v243 = vmul.f32 %v237, 0.2
    %v244 = vmul.f32 %v240, 0.2
    %v245 = vmax.f32 %v237, %v243
    %v246 = vmax.f32 %v240, %v244
    %v247 = vpack.c.bf16 %v246, %v245
    %v248 = vld [vmem:[#allocation4] sm:$0xf]
    %v249 = vld [vmem:[#allocation4 + $0x4] sm:$0xf]
    %v250 = vld [vmem:[#allocation4 + $0x8] sm:$0xf]
    %v251 = vld [vmem:[#allocation4 + $0xc] sm:$0xf]
    %v252 = vld [vmem:[#allocation4 + $0x10] sm:$0xf]
    %v253 = vld [vmem:[#allocation4 + $0x14] sm:$0xf]
    %v254 = vld [vmem:[#allocation4 + $0x18] sm:$0xf]
    %v255 = vld [vmem:[#allocation4 + $0x1c] sm:$0xf]
    %v256 = vld [vmem:[#allocation4 + $0x20] sm:$0xf]
    %v257 = vld [vmem:[#allocation4 + $0x24] sm:$0xf]
    %v258 = vld [vmem:[#allocation4 + $0x28] sm:$0xf]
    %v259 = vld [vmem:[#allocation4 + $0x2c] sm:$0xf]
    %v260 = vld [vmem:[#allocation4 + $0x30] sm:$0xf]
    %v261 = vld [vmem:[#allocation4 + $0x34] sm:$0xf]
    %v262 = vld [vmem:[#allocation4 + $0x38] sm:$0xf]
    %v263 = vld [vmem:[#allocation4 + $0x3c] sm:$0xf]
    %v264 = vld [vmem:[%s6] sm:$0x1]
    %v266 = vlaneseq
    %v267 = vshrl.u32 %v266, 7
    %v268 = vsub.s32 0, %v267
    %v269 = vrot.slane %v264, %v268
    %v287 = vunpack.c.l.b16 %v248
    %v288 = vunpack.c.l.b16 %v249
    %v289 = vunpack.c.l.b16 %v250
    %v290 = vunpack.c.l.b16 %v251
    %v291 = vunpack.c.l.b16 %v252
    %v292 = vunpack.c.l.b16 %v253
    %v293 = vunpack.c.l.b16 %v254
    %v294 = vunpack.c.l.b16 %v255
    %v295 = vunpack.c.l.b16 %v256
    %v296 = vunpack.c.l.b16 %v257
    %v297 = vunpack.c.l.b16 %v258
    %v298 = vunpack.c.l.b16 %v259
    %v299 = vunpack.c.l.b16 %v260
    %v300 = vunpack.c.l.b16 %v261
    %v301 = vunpack.c.l.b16 %v262
    %v302 = vunpack.c.l.b16 %v263
    %v303 = vpack.c.b16 %v288, %v287
    %v304 = vpack.c.b16 %v290, %v289
    %v305 = vpack.c.b16 %v292, %v291
    %v306 = vpack.c.b16 %v294, %v293
    %v307 = vpack.c.b16 %v296, %v295
    %v308 = vpack.c.b16 %v298, %v297
    %v309 = vpack.c.b16 %v300, %v299
    %v310 = vpack.c.b16 %v302, %v301
    %319 = vmatprep.subr.bf16.mxu0 0
    %320 = vmatpush1.bf16.msra.mxu0 %v303
    %321 = vmatprep.subr.bf16.mxu0 0
    %322 = vmatpush1.bf16.msra.mxu0 %v304
    %323 = vmatprep.subr.bf16.mxu0 0
    %324 = vmatpush1.bf16.msra.mxu0 %v305
    %325 = vmatprep.subr.bf16.mxu0 0
    %326 = vmatpush1.bf16.msra.mxu0 %v306
    %327 = vmatprep.subr.bf16.mxu0 0
    %328 = vmatpush1.bf16.msra.mxu0 %v307
    %329 = vmatprep.subr.bf16.mxu0 0
    %330 = vmatpush1.bf16.msra.mxu0 %v308
    %331 = vmatprep.subr.bf16.mxu0 0
    %332 = vmatpush1.bf16.msra.mxu0 %v309
    %333 = vmatprep.subr.bf16.mxu0 0
    %334 = vmatpush1.bf16.msra.mxu0 %v310
    %335 = vmatprep.subr.bf16.mxu0 0
    %336 = vmatpush1.bf16.msra.mxu0 0
    %337 = vmatprep.subr.bf16.mxu0 0
    %338 = vmatpush1.bf16.msra.mxu0 0
    %339 = vmatprep.subr.bf16.mxu0 0
    %340 = vmatpush1.bf16.msra.mxu0 0
    %341 = vmatprep.subr.bf16.mxu0 0
    %342 = vmatpush1.bf16.msra.mxu0 0
    %343 = vmatprep.subr.bf16.mxu0 0
    %344 = vmatpush1.bf16.msra.mxu0 0
    %345 = vmatprep.subr.bf16.mxu0 0
    %346 = vmatpush1.bf16.msra.mxu0 0
    %347 = vmatprep.subr.bf16.mxu0 0
    %348 = vmatpush1.bf16.msra.mxu0 0
    %349 = vmatprep.subr.bf16.mxu0 0
    %350 = vmatpush1.bf16.msra.mxu0 0
    %351 = vmatprep.mubr.bf16.mxu0 0
    %352 = vmatmul.mubr.bf16.gmra.mrb[0].mxu0 %v247
    %v353 = vpop.f32.mrb[0].mxu0
    %v354 = vadd.f32 %v269, %v353
    %v355 = vpop.f32.mrb[0].mxu0
    %v356 = vpop.f32.mrb[0].mxu0
    %v357 = vadd.f32 %v269, %v356
    %v358 = vpop.f32.mrb[0].mxu0
    %359 = vdwg.mxu0
    %v360 = vsub.f32 0.0, %v354
    %v361 = vsub.f32 0.0, %v357
    %v362 = vmul.f32 %v360, 1.442695
    %v363 = vpow.pop %v362
    %v364 = vmul.f32 %v361, 1.442695
    %v365 = vpow.pop %v364
    %v366 = vadd.f32 %v363, 1.0
    %v367 = vadd.f32 %v365, 1.0
    %v368 = vrcp.pop %v366
    %v369 = vrcp.pop %v367
    %370 = vst [vmem:[%s7] sm:$0xff] %v368
    %371 = vst [vmem:[%s7 + $0x8] sm:$0xff] %v369
    // Predicated region
    $region38: #{discriminator_forward.1} parent=1 // pred_check
      _
    $region39: #{discriminator_forward.1} parent=1 // pred_check_branch
      %373 = sbr.rel (0) target = $region41
    $region40: #{discriminator_forward.1} parent=1 // pred_region
      _
    $region41: #{discriminator_forward.1} parent=1 // pred_fallthru
      _
    // Predicated region
    $region42: #{discriminator_forward.1} parent=1 // pred_check
      _
    $region43: #{discriminator_forward.1} parent=1 // pred_check_branch
      %375 = sbr.rel (0) target = $region45
    $region44: #{discriminator_forward.1} parent=1 // pred_region
      _
    $region45: #{discriminator_forward.1} parent=1 // pred_fallthru
      _
    %376 = vsyncpa [#allocation3], 1
    %377 = vsyncpa [#allocation5], 1

</llo_original>
